<compile_context>
chip_gen: v7x
topology: tpu7x:2x2x1
jax: 0.10.0
libtpu: 0.0.40
codegen_flags: <defaults>
</compile_context>

<pallas_src>
import jax
import jax.numpy as jnp
from jax.experimental import pallas as pl
from jax.experimental.pallas import tpu as pltpu


_LANE = 128                    # lane-dense last dim (one vreg lane width)
_MAX_BLOCK_BYTES = 8 << 20     # ~8 MiB per block -> ~32 MiB with double-buffering
_SINGLE_BLOCK_BYTES = 2 << 20  # below this: one block; above: >= _MIN_STEPS blocks
_MIN_STEPS = 4                 # grid steps needed to overlap in-DMA/compute/out-DMA


def _temperature_scale_kernel(t_ref, x_ref, o_ref):
    # t_ref: (1,) float32 temperature in SMEM.  1/T is one scalar-unit divide
    # per grid step; the vector path is a single multiply (+ cast for sub-f32
    # dtypes), so the kernel stays purely HBM-bandwidth bound.
    inv_t = 1.0 / t_ref[0]                          # f32 scalar
    x = x_ref[...].astype(jnp.float32)
    o_ref[...] = (x * inv_t).astype(o_ref.dtype)


def temperature_scale(logits: jax.Array, temperature: jax.Array, *,
                      in_place: bool = False) -> jax.Array:
    """logits: any-shape float array; temperature: (1,) array. Returns logits/T."""
    orig_shape = logits.shape
    orig_dtype = logits.dtype
    total = logits.size
    itemsize = jnp.dtype(orig_dtype).itemsize

    # --- flatten to a lane-dense 2D slab (no copy when total % 128 == 0) -----
    flat = logits.reshape(-1)
    lane_pad = (-total) % _LANE
    if lane_pad:
        # Fallback only: costs one extra read+write pass over the tensor.
        flat = jnp.pad(flat, (0, lane_pad))
    rows = flat.shape[0] // _LANE
    x2d = flat.reshape(rows, _LANE)

    # --- pick the row-block size ---------------------------------------------
    row_bytes = _LANE * itemsize
    if rows * row_bytes <= _SINGLE_BLOCK_BYTES:
        block_rows = rows                        # full extent -> no (8,128) issue
    else:
        target = pl.cdiv(rows, _MIN_STEPS)       # >= _MIN_STEPS steps for overlap
        target = ((target + 7) // 8) * 8         # sublane multiple of 8
        block_rows = min(_MAX_BLOCK_BYTES // row_bytes, target)
    grid = (pl.cdiv(rows, block_rows),)          # ragged last block is fine

    out2d = pl.pallas_call(
        _temperature_scale_kernel,
        out_shape=jax.ShapeDtypeStruct((rows, _LANE), orig_dtype),
        grid_spec=pltpu.PrefetchScalarGridSpec(
            num_scalar_prefetch=0,
            grid=grid,
            in_specs=[
                # scalar temperature, always float32, lives in SMEM
                pl.BlockSpec(memory_space=pltpu.SMEM),
                # logits tiled along rows, full lane-dense width (unmasked vst)
                pl.BlockSpec((block_rows, _LANE), lambda i: (i, 0)),
            ],
            out_specs=pl.BlockSpec((block_rows, _LANE), lambda i: (i, 0)),
        ),
        input_output_aliases=({1: 0} if in_place else {}),
        compiler_params=pltpu.CompilerParams(
            dimension_semantics=("parallel",),   # lets v7x shard rows over 2 TCs
            vmem_limit_bytes=48 << 20,           # usage <= ~32 MiB double-buffered
        ),
    )(jnp.asarray(temperature, dtype=jnp.float32).reshape(1), x2d)

    out_flat = out2d.reshape(-1)
    if lane_pad:
        out_flat = out_flat[:total]
    return out_flat.reshape(orig_shape)


if __name__ == "__main__":
    key = jax.random.PRNGKey(0)
    k1, k2, k3, k4 = jax.random.split(key, 4)

    # Parameter init matching nn.Parameter(torch.ones(1)), plus a non-trivial T
    T_init = jnp.ones((1,), dtype=jnp.float32)
    T_val = jnp.array([1.7], dtype=jnp.float32)

    # Case 1: lane-aligned logits (batch=16, classes=128)
    x1 = jax.random.normal(k1, (16, 128), dtype=jnp.float32)
    # Case 2: typical classifier head, C not a multiple of 128 (N*C is)
    x2 = jax.random.normal(k2, (64, 10), dtype=jnp.float32)
    # Case 3: bf16 logits (1/T must stay f32)
    x3 = jax.random.normal(k3, (8, 256), dtype=jnp.float32).astype(jnp.bfloat16)
    # Case 4: total not divisible by 128 AND large enough for a multi-step grid
    x4 = jax.random.normal(k4, (4200, 131), dtype=jnp.float32)

    ok = True
    for x in (x1, x2, x3, x4):
        for T in (T_init, T_val):
            out = jax.block_until_ready(temperature_scale(x, T))
            ref = (x.astype(jnp.float32) / T[0]).astype(x.dtype)
            ok &= out.shape == x.shape and out.dtype == x.dtype
            tol = 1e-6 if x.dtype == jnp.float32 else 1e-2
            ok &= bool(jnp.allclose(out.astype(jnp.float32),
                                    ref.astype(jnp.float32), rtol=tol, atol=tol))

    # Aliased (in-place) path, exercised under jit so the aliased operand is an
    # internal intermediate.
    out_ip = jax.block_until_ready(
        jax.jit(lambda x, t: temperature_scale(x, t, in_place=True))(x1, T_val))
    ok &= bool(jnp.allclose(out_ip, x1 / T_val[0], rtol=1e-6, atol=1e-6))

    assert ok, "mismatch vs reference"
    print("KERNEL_OK")
</pallas_src>

<mosaic_0001>
module attributes {stable_mosaic.version = 11 : i64} {
  func.func @_temperature_scale_kernel(%arg0: i32, %arg1: memref<1xf32, #tpu.memory_space<smem>>, %arg2: memref<16x128xf32, #tpu.memory_space<vmem>>, %arg3: memref<16x128xf32, #tpu.memory_space<vmem>>) attributes {dimension_semantics = [#tpu.dimension_semantics<parallel>], iteration_bounds = array<i64: 1>, scalar_prefetch = 0 : i64, scratch_operands = 0 : i64, tpu.core_type = #tpu.core_type<tc>, window_params = [{transform_indices = @transform_0, window_bounds = array<i64: 1>}, {transform_indices = @transform_1, window_bounds = array<i64: 16, 128>}, {transform_indices = @transform_2, window_bounds = array<i64: 16, 128>}]} {
    %c0 = arith.constant 0 : index
    %0 = memref.load %arg1[%c0] : memref<1xf32, #tpu.memory_space<smem>>
    %cst = arith.constant 1.000000e+00 : f32
    %1 = arith.divf %cst, %0 : f32
    %c0_0 = arith.constant 0 : index
    %c0_1 = arith.constant 0 : index
    %2 = vector.load %arg2[%c0_0, %c0_1] : memref<16x128xf32, #tpu.memory_space<vmem>>, vector<16x128xf32>
    %3 = vector.broadcast %1 : f32 to vector<16x128xf32>
    %4 = arith.mulf %2, %3 : vector<16x128xf32>
    %c0_2 = arith.constant 0 : index
    %c0_3 = arith.constant 0 : index
    %5 = vector.load %arg3[%c0_2, %c0_3] : memref<16x128xf32, #tpu.memory_space<vmem>>, vector<16x128xf32>
    tpu.vector_store %arg3[%c0_2, %c0_3], %4 {strides = array<i32>} : memref<16x128xf32, #tpu.memory_space<vmem>>, vector<16x128xf32>,
    return
  }
  func.func @transform_0(%arg0: i32) -> i32 {
    %c0_i32 = arith.constant 0 : i32
    %c0_i32_0 = arith.constant 0 : i32
    return %c0_i32 : i32
  }
  func.func @transform_1(%arg0: i32) -> (i32, i32) {
    %c0_i32 = arith.constant 0 : i32
    %c0_i32_0 = arith.constant 0 : i32
    return %arg0, %c0_i32 : i32, i32
  }
  func.func @transform_2(%arg0: i32) -> (i32, i32) {
    %c0_i32 = arith.constant 0 : i32
    %c0_i32_0 = arith.constant 0 : i32
    return %arg0, %c0_i32 : i32, i32
  }
}

</mosaic_0001>

<llo_original>
// kernel: tpu_custom_call.1
$region0: #{tpu_custom_call.1}
  #allocation0 [shape = 'u32[]', space=smem, size = 0x4, offset = 0x4, fixed_abs, tag = 'smem constant byte address 0x4 - core index']
  #allocation1 [shape = 'u32[144,128]{1,0:T(1,128)}', space=vmem, size = 0x12000, scoped, tag = 'internal scratch']
  #allocation2 [shape = 'f32[1]{0:T(128)S(6)}', space=smem, size = 0x200, scoped, tag = 'scoped memory for tpu_custom_call.1']
  %s0 = inlined_call_operand.<no memory space> [shape: f32[1], index: 0, kind: input, shape index: {}]
  %s1 = inlined_call_operand.hbm [shape: f32[16,128], index: 1, kind: input, shape index: {}]
  %s2 = inlined_call_operand.hbm [shape: f32[16,128], index: 2, kind: output, shape index: {}]
  %s3 = sld [smem:[#allocation0]]
  $region22: #{tpu_custom_call.1} parent=0
    _
  %s5 = ssub.s32 1, %s3
  %s6 = scalar_select 0, %s5, %s3
  %7 = sst [smem:[#allocation2]] %s0
  $region1: #{tpu_custom_call.1} parent=0
    #allocation3 [shape = 'u8[8192]{0}', space=vmem, size = 0x2000, scoped, tag = 'input window, operand 1, single buffered']
    #allocation4 [shape = 's32[1]{0}', space=sflag, size = 0x4, scoped, tag = 'scoped memory for tpu_custom_call.1']
    #allocation5 [shape = 's32[1]{0}', space=sflag, size = 0x4, scoped, tag = 'scoped memory for tpu_custom_call.1']
    #allocation6 [shape = 'u8[8192]{0}', space=vmem, size = 0x2000, scoped, tag = 'output window, operand 0, single buffered']
    %8 = vsyncpa [#allocation4], 0
    %9 = vsyncpa [#allocation5], 0
    // Predicated region
    $region2: #{tpu_custom_call.1} parent=1 // pred_check
      _
    $region3: #{tpu_custom_call.1} parent=1 // pred_check_branch
      %11 = sbr.rel (0) target = $region5
    $region4: #{tpu_custom_call.1} parent=1 // pred_region
      _
    $region5: #{tpu_custom_call.1} parent=1 // pred_fallthru
      _
    // Predicated region
    $region6: #{tpu_custom_call.1} parent=1 // pred_check
      _
    $region7: #{tpu_custom_call.1} parent=1 // pred_check_branch
      %13 = sbr.rel (0) target = $region9
    $region8: #{tpu_custom_call.1} parent=1 // pred_region
      %s15 = ssub.s32 256, 256
      %16 = vsyncadd [#allocation4], %s15
      %s17 = sshll.u32 [#allocation3], 4
      %s18 = int_to_ptr.vmem [resolvable:$true] %s17
      %23 = dma.hbm_to_vmem [thread:$0]  %s1, 256, %s18, [#allocation4], 128, 128, 8
    $region9: #{tpu_custom_call.1} parent=1 // pred_fallthru
      _
    // Predicated region
    $region10: #{tpu_custom_call.1} parent=1 // pred_check
      _
    $region11: #{tpu_custom_call.1} parent=1 // pred_check_branch
      %25 = sbr.rel (0) target = $region13
    $region12: #{tpu_custom_call.1} parent=1 // pred_region
      %26 = dma.done [#allocation4], 256
    $region13: #{tpu_custom_call.1} parent=1 // pred_fallthru
      _
    %s27 = sld [smem:[#allocation2]]
    %v28 = vstv %s27
    %v29 = vrcp.pop %v28
    %s30 = vtos %v29
    %v31 = vld [vmem:[#allocation3] sm:$0xff]
    %v32 = vld [vmem:[#allocation3 + $0x8] sm:$0xff]
    %v33 = vstv %s30
    %v34 = vmul.f32 %v31, %v33
    %v35 = vmul.f32 %v32, %v33
    %36 = vst [vmem:[#allocation6] sm:$0xff] %v34
    %37 = vst [vmem:[#allocation6 + $0x8] sm:$0xff] %v35
    // Predicated region
    $region14: #{tpu_custom_call.1} parent=1 // pred_check
      _
    $region15: #{tpu_custom_call.1} parent=1 // pred_check_branch
      %39 = sbr.rel (0) target = $region17
    $region16: #{tpu_custom_call.1} parent=1 // pred_region
      %s41 = ssub.s32 256, 256
      %42 = vsyncadd [#allocation5], %s41
      %s43 = sshll.u32 [#allocation6], 4
      %s44 = int_to_ptr.vmem [resolvable:$true] %s43
      %49 = dma.vmem_to_hbm [thread:$0]  %s44, 256, %s2, [#allocation5], 128, 128, 8
    $region17: #{tpu_custom_call.1} parent=1 // pred_fallthru
      _
    // Predicated region
    $region18: #{tpu_custom_call.1} parent=1 // pred_check
      _
    $region19: #{tpu_custom_call.1} parent=1 // pred_check_branch
      %51 = sbr.rel (0) target = $region21
    $region20: #{tpu_custom_call.1} parent=1 // pred_region
      %52 = dma.done [#allocation5], 256
    $region21: #{tpu_custom_call.1} parent=1 // pred_fallthru
      _
    %53 = vsyncpa [#allocation4], 1
    %54 = vsyncpa [#allocation5], 1

</llo_original>
